<compile_context>
chip_gen: v7x
topology: tpu7x:2x2x1
jax: 0.10.0
libtpu: 0.0.40
codegen_flags: <defaults>
</compile_context>

<pallas_src>
import numpy as np
import jax
import jax.numpy as jnp
from jax.experimental import pallas as pl
from jax.experimental.pallas import tpu as pltpu

# ----------------------------- configuration --------------------------------
NUM_CLASSES = 4          # DetectionLoss(num_classes=...)
# HungarianMatcher coefficients (defaults)
COST_CLASS = 1.0
COST_BBOX = 1.0
COST_GIOU = 1.0
# DetectionLoss coefficients (DETR-like defaults)
CLASS_LOSS_COEF = 1.0
BBOX_LOSS_COEF = 5.0
GIOU_LOSS_COEF = 2.0

LANE = 128
SUBLANE = 8


def _round_up(x, m):
    return ((x + m - 1) // m) * m


# ------------------------------ kernel helpers -------------------------------
def _giou(o_cx, o_cy, o_w, o_h, t_cx, t_cy, t_w, t_h, *, approx=False):
    """Generalized IoU.  Inputs broadcast ([Q,1] vs [1,T]) or match elementwise."""
    o_x0 = o_cx - 0.5 * o_w
    o_y0 = o_cy - 0.5 * o_h
    o_x1 = o_cx + 0.5 * o_w
    o_y1 = o_cy + 0.5 * o_h
    t_x0 = t_cx - 0.5 * t_w
    t_y0 = t_cy - 0.5 * t_h
    t_x1 = t_cx + 0.5 * t_w
    t_y1 = t_cy + 0.5 * t_h

    # Areas straight from widths/heights (== corner differences), saves narrow subs.
    area1 = o_w * o_h
    area2 = t_w * t_h

    lt_x = jnp.maximum(o_x0, t_x0)
    lt_y = jnp.maximum(o_y0, t_y0)
    rb_x = jnp.minimum(o_x1, t_x1)
    rb_y = jnp.minimum(o_y1, t_y1)
    inter = jnp.maximum(rb_x - lt_x, 0.0) * jnp.maximum(rb_y - lt_y, 0.0)
    union = area1 + area2 - inter

    # Enclosing-box extents are non-negative by construction: no clamps needed.
    el_x = jnp.minimum(o_x0, t_x0)
    el_y = jnp.minimum(o_y0, t_y0)
    er_x = jnp.maximum(o_x1, t_x1)
    er_y = jnp.maximum(o_y1, t_y1)
    area = (er_x - el_x) * (er_y - el_y)

    if approx:
        # EUP approximate reciprocal: fine for the matcher (used only for argmin);
        # near-tied costs may resolve differently than the exact PyTorch matcher.
        iou = inter * pl.reciprocal(union + 1e-6, approx=True)
        return iou - (area - union) * pl.reciprocal(area + 1e-6, approx=True)
    iou = inter / (union + 1e-6)
    return iou - (area - union) / (area + 1e-6)


# ------------------------------ Pallas kernels --------------------------------
def _cost_kernel(logits_ref, pbox_ref, tboxT_ref, tlab_ref, cost_ref):
    """Per-image Hungarian-matcher cost tile: [TQ, T_pad]."""
    logits = logits_ref[...]                               # [TQ, C]
    C = logits.shape[1]
    m = jnp.max(logits, axis=-1, keepdims=True)
    e = jnp.exp(logits - m)
    prob = e * pl.reciprocal(jnp.sum(e, axis=-1, keepdims=True), approx=True)  # softmax

    tlab = tlab_ref[...]                                   # [1, T_pad] int32 (-1 = pad)

    # cost_class = -prob[:, tgt_ids] via a single select chain (C full-tile ops).
    cc = jnp.where(tlab == 0, prob[:, 0:1], 0.0)
    for c in range(1, C):
        cc = jnp.where(tlab == c, prob[:, c:c + 1], cc)    # [TQ, T_pad]

    pb = pbox_ref[...]                                     # [TQ, 4]  cxcywh
    tbT = tboxT_ref[...]                                   # [4, T_pad]
    o_cx, o_cy, o_w, o_h = pb[:, 0:1], pb[:, 1:2], pb[:, 2:3], pb[:, 3:4]
    t_cx, t_cy, t_w, t_h = tbT[0:1, :], tbT[1:2, :], tbT[2:3, :], tbT[3:4, :]

    # L1 cdist
    cost_bbox = (jnp.abs(o_cx - t_cx) + jnp.abs(o_cy - t_cy)
                 + jnp.abs(o_w - t_w) + jnp.abs(o_h - t_h))            # [TQ, T_pad]

    giou = _giou(o_cx, o_cy, o_w, o_h, t_cx, t_cy, t_w, t_h, approx=True)

    if COST_CLASS == 1.0 and COST_BBOX == 1.0 and COST_GIOU == 1.0:
        # Weights are compile-time 1.0: fold the multiplies off the saturated VALU slot.
        cost_ref[...] = cost_bbox - cc - giou
    else:
        cost_ref[...] = (COST_BBOX * cost_bbox
                         - COST_CLASS * cc
                         - COST_GIOU * giou)


def _loss_kernel(logitsT_ref, tc_ref, sboxT_ref, tboxT_ref, meta_ref, out_ref, ce_acc):
    """Cross-entropy over all queries (blocked over Q) + matched-box L1 / GIoU losses.

    logitsT block: [C, TQL] (Q lane-dense), tc block: [1, TQL] (-1 marks Q padding),
    boxes transposed [4, M].  meta (SMEM): [1, 3] = (num_boxes >= 1, box_valid, Q).
    out (SMEM): [1, 4] = (loss_ce, loss_bbox, loss_giou, total).
    """
    q = pl.program_id(0)

    @pl.when(q == 0)
    def _():
        ce_acc[0] = 0.0

    lg = logitsT_ref[...]                                  # [C, TQL]
    tc = tc_ref[...]                                       # [1, TQL] int32

    # partial cross-entropy sum: sum over valid queries of (logsumexp - target logit)
    m = jnp.max(lg, axis=0, keepdims=True)                 # [1, TQL]
    lse = m + jnp.log(jnp.sum(jnp.exp(lg - m), axis=0, keepdims=True))
    cls_iota = jax.lax.broadcasted_iota(jnp.int32, lg.shape, 0)
    tgt_logit = jnp.sum(jnp.where(cls_iota == tc, lg, 0.0), axis=0, keepdims=True)
    ce_acc[0] += jnp.sum(jnp.where(tc >= 0, lse - tgt_logit, 0.0))

    @pl.when(q == pl.num_programs(0) - 1)
    def _():
        nb = meta_ref[0, 0]                                # num_boxes (clamped >= 1)
        valid = meta_ref[0, 1]                             # 0.0 if no matched boxes
        q_real = meta_ref[0, 2]                            # true B*N (pre-padding)

        loss_ce = ce_acc[0] / q_real                       # F.cross_entropy mean

        sb = sboxT_ref[...]                                # [4, M] matched preds
        gb = tboxT_ref[...]                                # [4, M] matched targets
        loss_bbox = valid * jnp.sum(jnp.abs(sb - gb)) / nb

        s_cx, s_cy, s_w, s_h = sb[0:1, :], sb[1:2, :], sb[2:3, :], sb[3:4, :]
        g_cx, g_cy, g_w, g_h = gb[0:1, :], gb[1:2, :], gb[2:3, :], gb[3:4, :]
        giou_diag = _giou(s_cx, s_cy, s_w, s_h, g_cx, g_cy, g_w, g_h)  # [1, M]
        loss_giou = valid * jnp.sum(1.0 - giou_diag) / nb

        out_ref[0, 0] = loss_ce
        out_ref[0, 1] = loss_bbox
        out_ref[0, 2] = loss_giou
        out_ref[0, 3] = (CLASS_LOSS_COEF * loss_ce
                         + BBOX_LOSS_COEF * loss_bbox
                         + GIOU_LOSS_COEF * loss_giou)


# ------------------------------ wrappers --------------------------------------
def compute_cost_matrix(pred_logits, pred_boxes, tlab_pad, tboxT_pad):
    """Block-diagonal cost matrix: [B, Np, T_pad] (per-image targets only)."""
    B, N, C = pred_logits.shape
    T_pad = int(tboxT_pad.shape[-1])

    # Query tile: cover each image with as few tiles as possible (ideally one), but
    # keep the double-buffered working set (out tile + logits + boxes) under ~16 MiB
    # so v7x's 64 MiB VMEM is comfortable (v5e/v6e have 2x the headroom).
    budget = 16 << 20
    per_row = 2 * 4 * (T_pad + C + 4)                      # f32, double buffered
    cap = max(SUBLANE, (budget // per_row) // SUBLANE * SUBLANE)
    TQ = min(_round_up(N, SUBLANE), cap)
    Np = _round_up(N, TQ)
    if B == 1 and Np // TQ < 2 and N > SUBLANE:
        # Keep >= 2 grid programs so both v7x TensorCores get work (no-op on v5e/v6e).
        TQ = max(SUBLANE, _round_up((N + 1) // 2, SUBLANE))
        Np = _round_up(N, TQ)

    logits = pred_logits.astype(jnp.float32)
    boxes = pred_boxes.astype(jnp.float32)
    if Np != N:
        logits = jnp.pad(logits, ((0, 0), (0, Np - N), (0, 0)))
        boxes = jnp.pad(boxes, ((0, 0), (0, Np - N), (0, 0)))

    # Explicit scoped-VMEM budget, recomputed from the chosen tile (x2 double buffer).
    tile_bytes = 4 * (TQ * C + TQ * 4 + 4 * T_pad + T_pad + TQ * T_pad)
    vmem_limit = int(min(max(2 * tile_bytes + (8 << 20), 16 << 20), 48 << 20))

    cost = pl.pallas_call(
        _cost_kernel,
        out_shape=jax.ShapeDtypeStruct((B, Np, T_pad), jnp.float32),
        grid=(B, Np // TQ),
        in_specs=[
            pl.BlockSpec((None, TQ, C), lambda b, q: (b, q, 0)),      # logits tile
            pl.BlockSpec((None, TQ, 4), lambda b, q: (b, q, 0)),      # pred boxes tile
            pl.BlockSpec((None, 4, T_pad), lambda b, q: (b, 0, 0)),   # this image's targets
            pl.BlockSpec((None, 1, T_pad), lambda b, q: (b, 0, 0)),   # this image's labels
        ],
        out_specs=pl.BlockSpec((None, TQ, T_pad), lambda b, q: (b, q, 0)),
        compiler_params=pltpu.CompilerParams(
            dimension_semantics=("parallel", "parallel"),
            vmem_limit_bytes=vmem_limit),
    )(logits, boxes, tboxT_pad, tlab_pad)
    return cost                                            # caller slices [:, :N, :T_i]


def compute_losses(pred_logits, target_classes, src_boxesT, tgt_boxesT,
                   num_boxes, box_valid):
    B, N, C = pred_logits.shape
    Q = B * N
    logitsT = pred_logits.reshape(Q, C).astype(jnp.float32).T          # [C, Q] lane-dense
    tc = jnp.asarray(target_classes).reshape(1, Q).astype(jnp.int32)   # [1, Q]

    # Block over Q so VMEM stays bounded at realistic B*N*C; tile sized from budget.
    budget = 8 << 20
    per_col = 2 * 4 * (C + 1)                              # logits + labels, x2 buffers
    cap = max(LANE, min((budget // per_col) // LANE * LANE, 8192))
    TQL = min(_round_up(Q, LANE), cap)
    Qp = _round_up(Q, TQL)
    if Qp != Q:
        logitsT = jnp.pad(logitsT, ((0, 0), (0, Qp - Q)))
        tc = jnp.pad(tc, ((0, 0), (0, Qp - Q)), constant_values=-1)    # -1 = Q padding

    M = int(src_boxesT.shape[1])
    meta = jnp.asarray([[float(num_boxes), float(box_valid), float(Q)]],
                       dtype=jnp.float32)

    vmem_limit = int(min(max(12 * 4 * (C + 1) * TQL + (4 << 20), 16 << 20), 48 << 20))

    out = pl.pallas_call(
        _loss_kernel,
        out_shape=jax.ShapeDtypeStruct((1, 4), jnp.float32),
        grid=(Qp // TQL,),
        in_specs=[
            pl.BlockSpec((C, TQL), lambda q: (0, q)),                  # logits^T tile
            pl.BlockSpec((1, TQL), lambda q: (0, q)),                  # target classes tile
            pl.BlockSpec((4, M), lambda q: (0, 0)),                    # matched pred boxes
            pl.BlockSpec((4, M), lambda q: (0, 0)),                    # matched tgt boxes
            pl.BlockSpec((1, 3), lambda q: (0, 0),
                         memory_space=pltpu.MemorySpace.SMEM),         # scalars
        ],
        out_specs=pl.BlockSpec((1, 4), lambda q: (0, 0),
                               memory_space=pltpu.MemorySpace.SMEM),
        scratch_shapes=[pltpu.SMEM((1,), jnp.float32)],                # CE partial sum
        compiler_params=pltpu.CompilerParams(
            dimension_semantics=("arbitrary",),
            vmem_limit_bytes=vmem_limit),
    )(logitsT, tc, src_boxesT, tgt_boxesT, meta)
    return out[0, 0], out[0, 1], out[0, 2], out[0, 3]


# ---------------------- host Hungarian (Jonker-Volgenant) ----------------------
# TODO(synk): the Hungarian assignment is a sequential combinatorial algorithm with no
# clean Pallas equivalent; it runs on host (O(n^2 m) shortest augmenting path).
def _hungarian_rows(cost):
    """For cost (n, m) with n <= m, return col_of_row[n] minimizing total cost."""
    cost = np.asarray(cost, dtype=np.float64)
    n, m = cost.shape
    INF = np.inf
    u = np.zeros(n + 1)
    v = np.zeros(m + 1)
    p = np.zeros(m + 1, dtype=np.int64)      # p[j]: row (1-based) matched to col j
    way = np.zeros(m + 1, dtype=np.int64)
    for i in range(1, n + 1):
        p[0] = i
        j0 = 0
        minv = np.full(m + 1, INF)
        used = np.zeros(m + 1, dtype=bool)
        while True:
            used[j0] = True
            i0 = p[j0]
            cur = cost[i0 - 1, :] - u[i0] - v[1:]
            free = ~used[1:]
            upd = free & (cur < minv[1:])
            minv[1:][upd] = cur[upd]
            way[1:][upd] = j0
            masked = np.where(free, minv[1:], INF)
            j1 = int(np.argmin(masked)) + 1
            delta = masked[j1 - 1]
            u[p[used]] += delta
            v[used] -= delta
            minv[~used] -= delta
            j0 = j1
            if p[j0] == 0:
                break
        while j0 != 0:
            j1 = way[j0]
            p[j0] = p[j1]
            j0 = j1
    col_of_row = np.full(n, -1, dtype=np.int64)
    for j in range(1, m + 1):
        if p[j] > 0:
            col_of_row[p[j] - 1] = j - 1
    return col_of_row


def linear_sum_assignment_np(cost):
    cost = np.asarray(cost, dtype=np.float64)
    n, m = cost.shape
    if n == 0 or m == 0:
        return np.empty(0, np.int64), np.empty(0, np.int64)
    if n <= m:
        cols = _hungarian_rows(cost)
        rows = np.arange(n, dtype=np.int64)
        return rows, cols
    rows = _hungarian_rows(cost.T)            # for each target its query
    cols = np.arange(m, dtype=np.int64)
    order = np.argsort(rows, kind="stable")
    return rows[order], cols[order]


# ------------------------------ full forward -----------------------------------
def detection_loss(pred_logits, pred_boxes, targets):
    """Full DetectionLoss.forward (standard, unfiltered path)."""
    B, N, C = pred_logits.shape
    sizes = [len(t["boxes"]) for t in targets]
    T_max = max(max(sizes) if sizes else 0, 1)
    T_pad = _round_up(T_max, LANE)            # lane-dense target axis

    # Per-image padded targets (block-diagonal cost: each image vs its own targets).
    tboxT_np = np.zeros((B, 4, T_pad), np.float32)
    tlab_np = np.full((B, 1, T_pad), -1, np.int32)
    for i, t in enumerate(targets):
        sz = sizes[i]
        if sz:
            tboxT_np[i, :, :sz] = np.asarray(t["boxes"], np.float32).T
            tlab_np[i, 0, :sz] = np.asarray(t["labels"], np.int32)

    # --- matcher cost matrix (Pallas, tiled & pipelined) ---
    cost = compute_cost_matrix(pred_logits, pred_boxes,
                               jnp.asarray(tlab_np), jnp.asarray(tboxT_np))
    # Single D2H: slice off padded query rows on device before transfer.
    cost_np = np.asarray(jax.device_get(cost[:, :N, :]))   # [B, N, T_pad]

    # --- Hungarian assignment (host) ---
    indices = []
    for i, sz in enumerate(sizes):
        if sz == 0:
            indices.append((np.empty(0, np.int64), np.empty(0, np.int64)))
        else:
            indices.append(linear_sum_assignment_np(cost_np[i, :, :sz]))

    num_boxes = float(max(sum(sizes), 1))

    # --- build loss targets; matched predicted boxes gathered on device ---
    target_classes = np.full((B, N), NUM_CLASSES, dtype=np.int32)
    flat_src_list, tgt_boxes_list = [], []
    for i, (src, j) in enumerate(indices):
        if len(src):
            target_classes[i, src] = np.asarray(targets[i]["labels"])[j]
            flat_src_list.append(i * N + src)
            tgt_boxes_list.append(np.asarray(targets[i]["boxes"], np.float32)[j])

    if flat_src_list:
        flat_src = np.concatenate(flat_src_list).astype(np.int32)
        tgt_boxes = np.concatenate(tgt_boxes_list, axis=0).astype(np.float32)
        src_boxesT = jnp.take(pred_boxes.reshape(B * N, 4).astype(jnp.float32),
                              jnp.asarray(flat_src), axis=0).T          # [4, M] on device
        tgt_boxesT = jnp.asarray(tgt_boxes.T)                            # [4, M]
        box_valid = 1.0
    else:
        src_boxesT = jnp.zeros((4, 1), jnp.float32)
        tgt_boxesT = jnp.zeros((4, 1), jnp.float32)
        box_valid = 0.0

    # --- losses (Pallas) ---
    ce, lbbox, lgiou, total = compute_losses(
        pred_logits, target_classes, src_boxesT, tgt_boxesT, num_boxes, box_valid)

    return {"loss_ce": ce, "loss_bbox": lbbox,
            "loss_giou": lgiou, "total_loss": total}


# ----------------------------------- main --------------------------------------
if __name__ == "__main__":
    key = jax.random.PRNGKey(0)
    B, N = 2, 8
    C = NUM_CLASSES + 1                       # logits include "no-object" class

    k1, k2, k3 = jax.random.split(key, 3)
    pred_logits = jax.random.normal(k1, (B, N, C), dtype=jnp.float32)
    pred_cxcy = jax.random.uniform(k2, (B, N, 2), minval=0.2, maxval=0.8)
    pred_wh = jax.random.uniform(k3, (B, N, 2), minval=0.05, maxval=0.3)
    pred_boxes = jnp.concatenate([pred_cxcy, pred_wh], axis=-1).astype(jnp.float32)

    # deterministic synthetic targets
    rng = np.random.RandomState(0)
    targets = []
    for sz in (3, 2):
        labels = rng.randint(0, NUM_CLASSES, size=(sz,)).astype(np.int64)
        cxcy = rng.uniform(0.2, 0.8, size=(sz, 2))
        wh = rng.uniform(0.05, 0.3, size=(sz, 2))
        boxes = np.concatenate([cxcy, wh], axis=1).astype(np.float32)
        targets.append({"labels": labels, "boxes": boxes})

    losses = detection_loss(pred_logits, pred_boxes, targets)
    jax.block_until_ready(losses["total_loss"])
    print("KERNEL_OK")
</pallas_src>

<mosaic_0001>
module attributes {stable_mosaic.version = 11 : i64} {
  func.func @_cost_kernel(%arg0: i32, %arg1: i32, %arg2: memref<1x8x5xf32, #tpu.memory_space<vmem>>, %arg3: memref<1x8x4xf32, #tpu.memory_space<vmem>>, %arg4: memref<1x4x128xf32, #tpu.memory_space<vmem>>, %arg5: memref<1x1x128xi32, #tpu.memory_space<vmem>>, %arg6: memref<1x8x128xf32, #tpu.memory_space<vmem>>) attributes {dimension_semantics = [#tpu.dimension_semantics<parallel>, #tpu.dimension_semantics<parallel>], iteration_bounds = array<i64: 2, 1>, scalar_prefetch = 0 : i64, scratch_operands = 0 : i64, tpu.core_type = #tpu.core_type<tc>, window_params = [{transform_indices = @transform_0, window_bounds = array<i64: 1, 8, 5>}, {transform_indices = @transform_1, window_bounds = array<i64: 1, 8, 4>}, {transform_indices = @transform_2, window_bounds = array<i64: 1, 4, 128>}, {transform_indices = @transform_3, window_bounds = array<i64: 1, 1, 128>}, {transform_indices = @transform_4, window_bounds = array<i64: 1, 8, 128>}]} {
    %c0 = arith.constant 0 : index
    %c0_0 = arith.constant 0 : index
    %c0_1 = arith.constant 0 : index
    %0 = vector.load %arg2[%c0, %c0_0, %c0_1] : memref<1x8x5xf32, #tpu.memory_space<vmem>>, vector<1x8x5xf32>
    %1 = vector.shape_cast %0 : vector<1x8x5xf32> to vector<8x5xf32>
    %cst = arith.constant dense<0xFF800000> : vector<8xf32>
    %2 = vector.multi_reduction <maximumf>, %1, %cst [1] : vector<8x5xf32> to vector<8xf32>
    %3 = vector.shape_cast %2 : vector<8xf32> to vector<8x1xf32>
    %4 = vector.broadcast %3 : vector<8x1xf32> to vector<8x5xf32>
    %5 = arith.subf %1, %4 : vector<8x5xf32>
    %6 = math.exp %5 : vector<8x5xf32>
    %cst_2 = arith.constant dense<0.000000e+00> : vector<8xf32>
    %7 = vector.multi_reduction <add>, %6, %cst_2 [1] : vector<8x5xf32> to vector<8xf32>
    %8 = vector.shape_cast %7 : vector<8xf32> to vector<8x1xf32>
    %9 = tpu.reciprocal %8 {approx = true} : vector<8x1xf32> -> vector<8x1xf32>
    %10 = vector.broadcast %9 : vector<8x1xf32> to vector<8x5xf32>
    %11 = arith.mulf %6, %10 : vector<8x5xf32>
    %c0_3 = arith.constant 0 : index
    %c0_4 = arith.constant 0 : index
    %c0_5 = arith.constant 0 : index
    %12 = vector.load %arg5[%c0_3, %c0_4, %c0_5] : memref<1x1x128xi32, #tpu.memory_space<vmem>>, vector<1x1x128xi32>
    %13 = vector.shape_cast %12 : vector<1x1x128xi32> to vector<1x128xi32>
    %c0_i32 = arith.constant 0 : i32
    %14 = vector.broadcast %c0_i32 : i32 to vector<1x128xi32>
    %15 = arith.cmpi eq, %13, %14 : vector<1x128xi32>
    %16 = vector.extract_strided_slice %11 {offsets = [0, 0], sizes = [8, 1], strides = [1, 1]} : vector<8x5xf32> to vector<8x1xf32>
    %cst_6 = arith.constant 0.000000e+00 : f32
    %17 = vector.shape_cast %15 : vector<1x128xi1> to vector<1x128xi1>
    %18 = vector.broadcast %17 : vector<1x128xi1> to vector<8x128xi1>
    %19 = vector.shape_cast %16 : vector<8x1xf32> to vector<8x1xf32>
    %20 = vector.broadcast %19 : vector<8x1xf32> to vector<8x128xf32>
    %21 = vector.broadcast %cst_6 : f32 to vector<8x128xf32>
    %22 = arith.select %18, %20, %21 : vector<8x128xi1>, vector<8x128xf32>
    %c1_i32 = arith.constant 1 : i32
    %23 = vector.broadcast %c1_i32 : i32 to vector<1x128xi32>
    %24 = arith.cmpi eq, %13, %23 : vector<1x128xi32>
    %25 = vector.extract_strided_slice %11 {offsets = [0, 1], sizes = [8, 1], strides = [1, 1]} : vector<8x5xf32> to vector<8x1xf32>
    %26 = vector.shape_cast %24 : vector<1x128xi1> to vector<1x128xi1>
    %27 = vector.broadcast %26 : vector<1x128xi1> to vector<8x128xi1>
    %28 = vector.shape_cast %25 : vector<8x1xf32> to vector<8x1xf32>
    %29 = vector.broadcast %28 : vector<8x1xf32> to vector<8x128xf32>
    %30 = arith.select %27, %29, %22 : vector<8x128xi1>, vector<8x128xf32>
    %c2_i32 = arith.constant 2 : i32
    %31 = vector.broadcast %c2_i32 : i32 to vector<1x128xi32>
    %32 = arith.cmpi eq, %13, %31 : vector<1x128xi32>
    %33 = vector.extract_strided_slice %11 {offsets = [0, 2], sizes = [8, 1], strides = [1, 1]} : vector<8x5xf32> to vector<8x1xf32>
    %34 = vector.shape_cast %32 : vector<1x128xi1> to vector<1x128xi1>
    %35 = vector.broadcast %34 : vector<1x128xi1> to vector<8x128xi1>
    %36 = vector.shape_cast %33 : vector<8x1xf32> to vector<8x1xf32>
    %37 = vector.broadcast %36 : vector<8x1xf32> to vector<8x128xf32>
    %38 = arith.select %35, %37, %30 : vector<8x128xi1>, vector<8x128xf32>
    %c3_i32 = arith.constant 3 : i32
    %39 = vector.broadcast %c3_i32 : i32 to vector<1x128xi32>
    %40 = arith.cmpi eq, %13, %39 : vector<1x128xi32>
    %41 = vector.extract_strided_slice %11 {offsets = [0, 3], sizes = [8, 1], strides = [1, 1]} : vector<8x5xf32> to vector<8x1xf32>
    %42 = vector.shape_cast %40 : vector<1x128xi1> to vector<1x128xi1>
    %43 = vector.broadcast %42 : vector<1x128xi1> to vector<8x128xi1>
    %44 = vector.shape_cast %41 : vector<8x1xf32> to vector<8x1xf32>
    %45 = vector.broadcast %44 : vector<8x1xf32> to vector<8x128xf32>
    %46 = arith.select %43, %45, %38 : vector<8x128xi1>, vector<8x128xf32>
    %c4_i32 = arith.constant 4 : i32
    %47 = vector.broadcast %c4_i32 : i32 to vector<1x128xi32>
    %48 = arith.cmpi eq, %13, %47 : vector<1x128xi32>
    %49 = vector.extract_strided_slice %11 {offsets = [0, 4], sizes = [8, 1], strides = [1, 1]} : vector<8x5xf32> to vector<8x1xf32>
    %50 = vector.shape_cast %48 : vector<1x128xi1> to vector<1x128xi1>
    %51 = vector.broadcast %50 : vector<1x128xi1> to vector<8x128xi1>
    %52 = vector.shape_cast %49 : vector<8x1xf32> to vector<8x1xf32>
    %53 = vector.broadcast %52 : vector<8x1xf32> to vector<8x128xf32>
    %54 = arith.select %51, %53, %46 : vector<8x128xi1>, vector<8x128xf32>
    %c0_7 = arith.constant 0 : index
    %c0_8 = arith.constant 0 : index
    %c0_9 = arith.constant 0 : index
    %55 = vector.load %arg3[%c0_7, %c0_8, %c0_9] : memref<1x8x4xf32, #tpu.memory_space<vmem>>, vector<1x8x4xf32>
    %56 = vector.shape_cast %55 : vector<1x8x4xf32> to vector<8x4xf32>
    %c0_10 = arith.constant 0 : index
    %c0_11 = arith.constant 0 : index
    %c0_12 = arith.constant 0 : index
    %57 = vector.load %arg4[%c0_10, %c0_11, %c0_12] : memref<1x4x128xf32, #tpu.memory_space<vmem>>, vector<1x4x128xf32>
    %58 = vector.shape_cast %57 : vector<1x4x128xf32> to vector<4x128xf32>
    %59 = vector.extract_strided_slice %56 {offsets = [0, 0], sizes = [8, 1], strides = [1, 1]} : vector<8x4xf32> to vector<8x1xf32>
    %60 = vector.extract_strided_slice %56 {offsets = [0, 1], sizes = [8, 1], strides = [1, 1]} : vector<8x4xf32> to vector<8x1xf32>
    %61 = vector.extract_strided_slice %56 {offsets = [0, 2], sizes = [8, 1], strides = [1, 1]} : vector<8x4xf32> to vector<8x1xf32>
    %62 = vector.extract_strided_slice %56 {offsets = [0, 3], sizes = [8, 1], strides = [1, 1]} : vector<8x4xf32> to vector<8x1xf32>
    %63 = vector.extract_strided_slice %58 {offsets = [0, 0], sizes = [1, 128], strides = [1, 1]} : vector<4x128xf32> to vector<1x128xf32>
    %64 = vector.extract_strided_slice %58 {offsets = [1, 0], sizes = [1, 128], strides = [1, 1]} : vector<4x128xf32> to vector<1x128xf32>
    %65 = vector.extract_strided_slice %58 {offsets = [2, 0], sizes = [1, 128], strides = [1, 1]} : vector<4x128xf32> to vector<1x128xf32>
    %66 = vector.extract_strided_slice %58 {offsets = [3, 0], sizes = [1, 128], strides = [1, 1]} : vector<4x128xf32> to vector<1x128xf32>
    %67 = vector.broadcast %59 : vector<8x1xf32> to vector<8x128xf32>
    %68 = vector.broadcast %63 : vector<1x128xf32> to vector<8x128xf32>
    %69 = arith.subf %67, %68 : vector<8x128xf32>
    %70 = math.absf %69 : vector<8x128xf32>
    %71 = vector.broadcast %60 : vector<8x1xf32> to vector<8x128xf32>
    %72 = vector.broadcast %64 : vector<1x128xf32> to vector<8x128xf32>
    %73 = arith.subf %71, %72 : vector<8x128xf32>
    %74 = math.absf %73 : vector<8x128xf32>
    %75 = arith.addf %70, %74 : vector<8x128xf32>
    %76 = vector.broadcast %61 : vector<8x1xf32> to vector<8x128xf32>
    %77 = vector.broadcast %65 : vector<1x128xf32> to vector<8x128xf32>
    %78 = arith.subf %76, %77 : vector<8x128xf32>
    %79 = math.absf %78 : vector<8x128xf32>
    %80 = arith.addf %75, %79 : vector<8x128xf32>
    %81 = vector.broadcast %62 : vector<8x1xf32> to vector<8x128xf32>
    %82 = vector.broadcast %66 : vector<1x128xf32> to vector<8x128xf32>
    %83 = arith.subf %81, %82 : vector<8x128xf32>
    %84 = math.absf %83 : vector<8x128xf32>
    %85 = arith.addf %80, %84 : vector<8x128xf32>
    %cst_13 = arith.constant 5.000000e-01 : f32
    %86 = vector.broadcast %cst_13 : f32 to vector<8x1xf32>
    %87 = arith.mulf %86, %61 : vector<8x1xf32>
    %88 = arith.subf %59, %87 : vector<8x1xf32>
    %cst_14 = arith.constant 5.000000e-01 : f32
    %89 = vector.broadcast %cst_14 : f32 to vector<8x1xf32>
    %90 = arith.mulf %89, %62 : vector<8x1xf32>
    %91 = arith.subf %60, %90 : vector<8x1xf32>
    %cst_15 = arith.constant 5.000000e-01 : f32
    %92 = vector.broadcast %cst_15 : f32 to vector<8x1xf32>
    %93 = arith.mulf %92, %61 : vector<8x1xf32>
    %94 = arith.addf %59, %93 : vector<8x1xf32>
    %cst_16 = arith.constant 5.000000e-01 : f32
    %95 = vector.broadcast %cst_16 : f32 to vector<8x1xf32>
    %96 = arith.mulf %95, %62 : vector<8x1xf32>
    %97 = arith.addf %60, %96 : vector<8x1xf32>
    %cst_17 = arith.constant 5.000000e-01 : f32
    %98 = vector.broadcast %cst_17 : f32 to vector<1x128xf32>
    %99 = arith.mulf %98, %65 : vector<1x128xf32>
    %100 = arith.subf %63, %99 : vector<1x128xf32>
    %cst_18 = arith.constant 5.000000e-01 : f32
    %101 = vector.broadcast %cst_18 : f32 to vector<1x128xf32>
    %102 = arith.mulf %101, %66 : vector<1x128xf32>
    %103 = arith.subf %64, %102 : vector<1x128xf32>
    %cst_19 = arith.constant 5.000000e-01 : f32
    %104 = vector.broadcast %cst_19 : f32 to vector<1x128xf32>
    %105 = arith.mulf %104, %65 : vector<1x128xf32>
    %106 = arith.addf %63, %105 : vector<1x128xf32>
    %cst_20 = arith.constant 5.000000e-01 : f32
    %107 = vector.broadcast %cst_20 : f32 to vector<1x128xf32>
    %108 = arith.mulf %107, %66 : vector<1x128xf32>
    %109 = arith.addf %64, %108 : vector<1x128xf32>
    %110 = arith.mulf %61, %62 : vector<8x1xf32>
    %111 = arith.mulf %65, %66 : vector<1x128xf32>
    %112 = vector.broadcast %88 : vector<8x1xf32> to vector<8x128xf32>
    %113 = vector.broadcast %100 : vector<1x128xf32> to vector<8x128xf32>
    %114 = arith.maximumf %112, %113 : vector<8x128xf32>
    %115 = vector.broadcast %91 : vector<8x1xf32> to vector<8x128xf32>
    %116 = vector.broadcast %103 : vector<1x128xf32> to vector<8x128xf32>
    %117 = arith.maximumf %115, %116 : vector<8x128xf32>
    %118 = vector.broadcast %94 : vector<8x1xf32> to vector<8x128xf32>
    %119 = vector.broadcast %106 : vector<1x128xf32> to vector<8x128xf32>
    %120 = arith.minimumf %118, %119 : vector<8x128xf32>
    %121 = vector.broadcast %97 : vector<8x1xf32> to vector<8x128xf32>
    %122 = vector.broadcast %109 : vector<1x128xf32> to vector<8x128xf32>
    %123 = arith.minimumf %121, %122 : vector<8x128xf32>
    %124 = arith.subf %120, %114 : vector<8x128xf32>
    %cst_21 = arith.constant 0.000000e+00 : f32
    %125 = vector.broadcast %cst_21 : f32 to vector<8x128xf32>
    %126 = arith.maximumf %124, %125 : vector<8x128xf32>
    %127 = arith.subf %123, %117 : vector<8x128xf32>
    %cst_22 = arith.constant 0.000000e+00 : f32
    %128 = vector.broadcast %cst_22 : f32 to vector<8x128xf32>
    %129 = arith.maximumf %127, %128 : vector<8x128xf32>
    %130 = arith.mulf %126, %129 : vector<8x128xf32>
    %131 = vector.broadcast %110 : vector<8x1xf32> to vector<8x128xf32>
    %132 = vector.broadcast %111 : vector<1x128xf32> to vector<8x128xf32>
    %133 = arith.addf %131, %132 : vector<8x128xf32>
    %134 = arith.subf %133, %130 : vector<8x128xf32>
    %135 = vector.broadcast %88 : vector<8x1xf32> to vector<8x128xf32>
    %136 = vector.broadcast %100 : vector<1x128xf32> to vector<8x128xf32>
    %137 = arith.minimumf %135, %136 : vector<8x128xf32>
    %138 = vector.broadcast %91 : vector<8x1xf32> to vector<8x128xf32>
    %139 = vector.broadcast %103 : vector<1x128xf32> to vector<8x128xf32>
    %140 = arith.minimumf %138, %139 : vector<8x128xf32>
    %141 = vector.broadcast %94 : vector<8x1xf32> to vector<8x128xf32>
    %142 = vector.broadcast %106 : vector<1x128xf32> to vector<8x128xf32>
    %143 = arith.maximumf %141, %142 : vector<8x128xf32>
    %144 = vector.broadcast %97 : vector<8x1xf32> to vector<8x128xf32>
    %145 = vector.broadcast %109 : vector<1x128xf32> to vector<8x128xf32>
    %146 = arith.maximumf %144, %145 : vector<8x128xf32>
    %147 = arith.subf %143, %137 : vector<8x128xf32>
    %148 = arith.subf %146, %140 : vector<8x128xf32>
    %149 = arith.mulf %147, %148 : vector<8x128xf32>
    %cst_23 = arith.constant 9.99999997E-7 : f32
    %150 = vector.broadcast %cst_23 : f32 to vector<8x128xf32>
    %151 = arith.addf %134, %150 : vector<8x128xf32>
    %152 = tpu.reciprocal %151 {approx = true} : vector<8x128xf32> -> vector<8x128xf32>
    %153 = arith.mulf %130, %152 : vector<8x128xf32>
    %154 = arith.subf %149, %134 : vector<8x128xf32>
    %cst_24 = arith.constant 9.99999997E-7 : f32
    %155 = vector.broadcast %cst_24 : f32 to vector<8x128xf32>
    %156 = arith.addf %149, %155 : vector<8x128xf32>
    %157 = tpu.reciprocal %156 {approx = true} : vector<8x128xf32> -> vector<8x128xf32>
    %158 = arith.mulf %154, %157 : vector<8x128xf32>
    %159 = arith.subf %153, %158 : vector<8x128xf32>
    %160 = arith.subf %85, %54 : vector<8x128xf32>
    %161 = arith.subf %160, %159 : vector<8x128xf32>
    %c0_25 = arith.constant 0 : index
    %c0_26 = arith.constant 0 : index
    %c0_27 = arith.constant 0 : index
    %162 = vector.load %arg6[%c0_25, %c0_26, %c0_27] : memref<1x8x128xf32, #tpu.memory_space<vmem>>, vector<1x8x128xf32>
    %163 = vector.shape_cast %162 : vector<1x8x128xf32> to vector<8x128xf32>
    %164 = vector.shape_cast %161 : vector<8x128xf32> to vector<1x8x128xf32>
    tpu.vector_store %arg6[%c0_25, %c0_26, %c0_27], %164 {strides = array<i32>} : memref<1x8x128xf32, #tpu.memory_space<vmem>>, vector<1x8x128xf32>,
    return
  }
  func.func @transform_0(%arg0: i32, %arg1: i32) -> (i32, i32, i32) {
    %c0_i32 = arith.constant 0 : i32
    %c0_i32_0 = arith.constant 0 : i32
    return %arg0, %arg1, %c0_i32 : i32, i32, i32
  }
  func.func @transform_1(%arg0: i32, %arg1: i32) -> (i32, i32, i32) {
    %c0_i32 = arith.constant 0 : i32
    %c0_i32_0 = arith.constant 0 : i32
    return %arg0, %arg1, %c0_i32 : i32, i32, i32
  }
  func.func @transform_2(%arg0: i32, %arg1: i32) -> (i32, i32, i32) {
    %c0_i32 = arith.constant 0 : i32
    %c0_i32_0 = arith.constant 0 : i32
    %c0_i32_1 = arith.constant 0 : i32
    return %arg0, %c0_i32, %c0_i32_0 : i32, i32, i32
  }
  func.func @transform_3(%arg0: i32, %arg1: i32) -> (i32, i32, i32) {
    %c0_i32 = arith.constant 0 : i32
    %c0_i32_0 = arith.constant 0 : i32
    %c0_i32_1 = arith.constant 0 : i32
    return %arg0, %c0_i32, %c0_i32_0 : i32, i32, i32
  }
  func.func @transform_4(%arg0: i32, %arg1: i32) -> (i32, i32, i32) {
    %c0_i32 = arith.constant 0 : i32
    %c0_i32_0 = arith.constant 0 : i32
    return %arg0, %arg1, %c0_i32 : i32, i32, i32
  }
}

</mosaic_0001>

<llo_original>
// kernel: tpu_custom_call.1
$region0: #{tpu_custom_call.1}
  #allocation0 [shape = 'u32[]', space=smem, size = 0x4, offset = 0x4, fixed_abs, tag = 'smem constant byte address 0x4 - core index']
  #allocation1 [shape = 'u32[144,128]{1,0:T(1,128)}', space=vmem, size = 0x12000, scoped, tag = 'internal scratch']
  %s0 = inlined_call_operand.vmem [shape: f32[2,8,5], index: 0, kind: input, shape index: {}]
  %s1 = inlined_call_operand.vmem [shape: f32[2,8,4], index: 1, kind: input, shape index: {}]
  %s2 = inlined_call_operand.vmem [shape: f32[2,4,128], index: 2, kind: input, shape index: {}]
  %s3 = inlined_call_operand.vmem [shape: s32[2,1,128], index: 3, kind: input, shape index: {}]
  %s4 = inlined_call_operand.hbm [shape: f32[2,8,128], index: 4, kind: output, shape index: {}]
  %s5 = sld [smem:[#allocation0]]
  $region49: #{tpu_custom_call.1} parent=0
    _
  %s7 = ssub.s32 1, %s5
  %s8 = scalar_select 0, %s7, %s5
  $region1: #{tpu_custom_call.1} parent=0
    #allocation2 [shape = 'u8[8192]{0}', space=vmem, size = 0x2000, scoped, tag = 'output window, operand 0']
    #allocation3 [shape = 's32[2]{0}', space=sflag, size = 0x8, scoped, tag = 'scoped memory for tpu_custom_call.1']
    %9 = vsyncpa [#allocation3], 0
    %s10 = scalar_lea.sflag [#allocation3], 1
    %11 = vsyncpa %s10, 0
    loop: start=0, step=1, limit=4
    $region2: #{tpu_custom_call.1} parent=1 // loop_pre_header
      _
    $region3: #{tpu_custom_call.1} parent=1 // loop_header
      %s13 = sphi 0, %s17
      %p14 = scmp.ge.s32.totalorder %s13, 4
      %s20 = sphi 0, %s32
      %s21 = sphi 0, %s28
      %s22 = sphi 0, %s20
      %s23 = sphi 0, %s21
      %s24 = sphi 0, %s22
      %s25 = sphi 0, %s23
      %s37 = sphi 0, %s39
      %s40 = sphi 0, %s37
      %s41 = sphi 0, %s40
      %s57 = sphi 0, %s41
      %s65 = sphi 0, %s67
      %s68 = sphi 0, %s65
      %s69 = sphi 0, %s68
      %s85 = sphi 0, %s69
      %s91 = sphi 0, %s93
      %s94 = sphi 0, %s91
      %s95 = sphi 0, %s94
      %s111 = sphi 0, %s95
      %s117 = sphi 0, %s119
      %s120 = sphi 0, %s117
      %s121 = sphi 0, %s120
      %s137 = sphi 0, %s121
      %s145 = sphi 0, %s147
      %s148 = sphi 0, %s145
      %s149 = sphi 0, %s148
      %s165 = sphi 0, %s149
    $region4: #{tpu_custom_call.1} parent=1 // loop_header_branch
      %16 = sbr.rel (%p14) target = $region8
    $region5: #{tpu_custom_call.1} parent=1 // loop_body
      %s18 = ssub.s32 %s13, 1
      %s19 = ssub.s32 %s13, 2
      %s26 = sadd.s32 1, %s21
      %p27 = scmp.ge.s32.totalorder %s26, 1
      %s28 = scalar_select %p27, 0, %s26
      %s29 = sadd.s32 1, %s20
      %s30 = scalar_select %p27, %s29, %s20
      %p31 = scmp.ge.s32.totalorder %s30, 2
      %s32 = scalar_select %p31, 0, %s30
      %s33 = ssub.s32 %s20, %s32
      %s34 = ssub.s32 %s21, %s28
      %s35 = sor.u32 %s33, %s34
      %p36 = scmp.eq.s32.totalorder %s35, 0
      %s38 = sadd.s32 %s37, 1
      %s39 = scalar_select %p36, %s37, %s38
      %p42 = pneg %p36
      %p43 = scmp.eq.s32.totalorder %s13, 1
      %p44 = por %p42, %p43
      %p45 = scmp.ne.s32.totalorder %s37, %s40
      %p46 = scmp.eq.s32.totalorder %s13, 0
      %p47 = por %p45, %p46
      %p48 = scmp.ne.s32.totalorder %s37, %s40
      %p49 = scmp.eq.s32.totalorder %s18, 1
      %p50 = por %p48, %p49
      %p51 = scmp.ne.s32.totalorder %s40, %s41
      %p52 = scmp.eq.s32.totalorder %s18, 0
      %p53 = por %p51, %p52
      %p54 = scmp.ne.s32.totalorder %s40, %s41
      %p55 = scmp.eq.s32.totalorder %s19, 1
      %p56 = por %p54, %p55
      %p58 = scmp.ne.s32.totalorder %s41, %s57
      %p59 = scmp.eq.s32.totalorder %s19, 0
      %p60 = por %p58, %p59
      %s61 = ssub.s32 %s20, %s32
      %s62 = ssub.s32 %s21, %s28
      %s63 = sor.u32 %s61, %s62
      %p64 = scmp.eq.s32.totalorder %s63, 0
      %s66 = sadd.s32 %s65, 1
      %s67 = scalar_select %p64, %s65, %s66
      %p70 = pneg %p64
      %p71 = scmp.eq.s32.totalorder %s13, 1
      %p72 = por %p70, %p71
      %p73 = scmp.ne.s32.totalorder %s65, %s68
      %p74 = scmp.eq.s32.totalorder %s13, 0
      %p75 = por %p73, %p74
      %p76 = scmp.ne.s32.totalorder %s65, %s68
      %p77 = scmp.eq.s32.totalorder %s18, 1
      %p78 = por %p76, %p77
      %p79 = scmp.ne.s32.totalorder %s68, %s69
      %p80 = scmp.eq.s32.totalorder %s18, 0
      %p81 = por %p79, %p80
      %p82 = scmp.ne.s32.totalorder %s68, %s69
      %p83 = scmp.eq.s32.totalorder %s19, 1
      %p84 = por %p82, %p83
      %p86 = scmp.ne.s32.totalorder %s69, %s85
      %p87 = scmp.eq.s32.totalorder %s19, 0
      %p88 = por %p86, %p87
      %s89 = ssub.s32 %s20, %s32
      %p90 = scmp.eq.s32.totalorder %s89, 0
      %s92 = sadd.s32 %s91, 1
      %s93 = scalar_select %p90, %s91, %s92
      %p96 = pneg %p90
      %p97 = scmp.eq.s32.totalorder %s13, 1
      %p98 = por %p96, %p97
      %p99 = scmp.ne.s32.totalorder %s91, %s94
      %p100 = scmp.eq.s32.totalorder %s13, 0
      %p101 = por %p99, %p100
      %p102 = scmp.ne.s32.totalorder %s91, %s94
      %p103 = scmp.eq.s32.totalorder %s18, 1
      %p104 = por %p102, %p103
      %p105 = scmp.ne.s32.totalorder %s94, %s95
      %p106 = scmp.eq.s32.totalorder %s18, 0
      %p107 = por %p105, %p106
      %p108 = scmp.ne.s32.totalorder %s94, %s95
      %p109 = scmp.eq.s32.totalorder %s19, 1
      %p110 = por %p108, %p109
      %p112 = scmp.ne.s32.totalorder %s95, %s111
      %p113 = scmp.eq.s32.totalorder %s19, 0
      %p114 = por %p112, %p113
      %s115 = ssub.s32 %s20, %s32
      %p116 = scmp.eq.s32.totalorder %s115, 0
      %s118 = sadd.s32 %s117, 1
      %s119 = scalar_select %p116, %s117, %s118
      %p122 = pneg %p116
      %p123 = scmp.eq.s32.totalorder %s13, 1
      %p124 = por %p122, %p123
      %p125 = scmp.ne.s32.totalorder %s117, %s120
      %p126 = scmp.eq.s32.totalorder %s13, 0
      %p127 = por %p125, %p126
      %p128 = scmp.ne.s32.totalorder %s117, %s120
      %p129 = scmp.eq.s32.totalorder %s18, 1
      %p130 = por %p128, %p129
      %p131 = scmp.ne.s32.totalorder %s120, %s121
      %p132 = scmp.eq.s32.totalorder %s18, 0
      %p133 = por %p131, %p132
      %p134 = scmp.ne.s32.totalorder %s120, %s121
      %p135 = scmp.eq.s32.totalorder %s19, 1
      %p136 = por %p134, %p135
      %p138 = scmp.ne.s32.totalorder %s121, %s137
      %p139 = scmp.eq.s32.totalorder %s19, 0
      %p140 = por %p138, %p139
      %s141 = ssub.s32 %s20, %s32
      %s142 = ssub.s32 %s21, %s28
      %s143 = sor.u32 %s141, %s142
      %p144 = scmp.eq.s32.totalorder %s143, 0
      %s146 = sadd.s32 %s145, 1
      %s147 = scalar_select %p144, %s145, %s146
      %p150 = pneg %p144
      %p151 = scmp.eq.s32.totalorder %s13, 1
      %p152 = por %p150, %p151
      %p153 = scmp.ne.s32.totalorder %s145, %s148
      %p154 = scmp.eq.s32.totalorder %s13, 0
      %p155 = por %p153, %p154
      %p156 = scmp.ne.s32.totalorder %s145, %s148
      %p157 = scmp.eq.s32.totalorder %s18, 1
      %p158 = por %p156, %p157
      %p159 = scmp.ne.s32.totalorder %s148, %s149
      %p160 = scmp.eq.s32.totalorder %s18, 0
      %p161 = por %p159, %p160
      %p162 = scmp.ne.s32.totalorder %s148, %s149
      %p163 = scmp.eq.s32.totalorder %s19, 1
      %p164 = por %p162, %p163
      %p166 = scmp.ne.s32.totalorder %s149, %s165
      %p167 = scmp.eq.s32.totalorder %s19, 0
      %p168 = por %p166, %p167
      %p169 = scmp.le.s32.totalorder 1, %s13
      %p170 = scmp.lt.s32.totalorder %s13, 3
      %p171 = pnand %p169, %p170
      %p172 = pneg %p171
      // Predicated region
      $region9: #{tpu_custom_call.1} parent=5 // pred_check
        _
      $region10: #{tpu_custom_call.1} parent=5 // pred_check_branch
        %174 = sbr.rel (%p171) target = $region12
      $region11: #{tpu_custom_call.1} parent=5 // pred_region
        %s175 = ssub.s32 %s13, 1
      $region12: #{tpu_custom_call.1} parent=5 // pred_fallthru
        _
      %p176 = scmp.lt.s32.totalorder %s13, 2
      // Predicated region
      $region13: #{tpu_custom_call.1} parent=5 // pred_check
        %p177 = pneg %p176
      $region14: #{tpu_custom_call.1} parent=5 // pred_check_branch
        %179 = sbr.rel (%p177) target = $region16
      $region15: #{tpu_custom_call.1} parent=5 // pred_region
        // Predicated region
        $region17: #{tpu_custom_call.1} parent=15 // pred_check
          %p180 = pneg %p47
        $region18: #{tpu_custom_call.1} parent=15 // pred_check_branch
          %182 = sbr.rel (%p180) target = $region20
        $region19: #{tpu_custom_call.1} parent=15 // pred_region
          %p183 = scmp.lt.s32.totalorder %s20, 1
          %s184 = scalar_select %p183, %s20, 1
          %p185 = scmp.lt.s32.totalorder %s21, 0
          %s186 = scalar_select %p185, %s21, 0
          %s187 = sadd.s32 %s186, %s184
          %s188 = smul.addr %s187, 8
          %s189 = scalar_lea.vmem %s0, %s188
        $region20: #{tpu_custom_call.1} parent=15 // pred_fallthru
          _
        // Predicated region
        $region21: #{tpu_custom_call.1} parent=15 // pred_check
          %p190 = pneg %p75
        $region22: #{tpu_custom_call.1} parent=15 // pred_check_branch
          %192 = sbr.rel (%p190) target = $region24
        $region23: #{tpu_custom_call.1} parent=15 // pred_region
          %p193 = scmp.lt.s32.totalorder %s20, 1
          %s194 = scalar_select %p193, %s20, 1
          %p195 = scmp.lt.s32.totalorder %s21, 0
          %s196 = scalar_select %p195, %s21, 0
          %s197 = sadd.s32 %s196, %s194
          %s198 = smul.addr %s197, 8
          %s199 = scalar_lea.vmem %s1, %s198
        $region24: #{tpu_custom_call.1} parent=15 // pred_fallthru
          _
        // Predicated region
        $region25: #{tpu_custom_call.1} parent=15 // pred_check
          %p200 = pneg %p101
        $region26: #{tpu_custom_call.1} parent=15 // pred_check_branch
          %202 = sbr.rel (%p200) target = $region28
        $region27: #{tpu_custom_call.1} parent=15 // pred_region
          %p203 = scmp.lt.s32.totalorder %s20, 1
          %s204 = scalar_select %p203, %s20, 1
          %s205 = smul.addr %s204, 4
          %s206 = scalar_lea.vmem %s2, %s205
        $region28: #{tpu_custom_call.1} parent=15 // pred_fallthru
          _
        // Predicated region
        $region29: #{tpu_custom_call.1} parent=15 // pred_check
          %p207 = pneg %p127
        $region30: #{tpu_custom_call.1} parent=15 // pred_check_branch
          %209 = sbr.rel (%p207) target = $region32
        $region31: #{tpu_custom_call.1} parent=15 // pred_region
          %p210 = scmp.lt.s32.totalorder %s20, 1
          %s211 = scalar_select %p210, %s20, 1
          %s212 = scalar_lea.vmem %s3, %s211
        $region32: #{tpu_custom_call.1} parent=15 // pred_fallthru
          _
      $region16: #{tpu_custom_call.1} parent=5 // pred_fallthru
        _
      %p213 = scmp.le.s32.totalorder 1, %s13
      %p214 = scmp.lt.s32.totalorder %s13, 3
      %p215 = pnand %p213, %p214
      %p216 = pneg %p215
      // Predicated region
      $region33: #{tpu_custom_call.1} parent=5 // pred_check
        _
      $region34: #{tpu_custom_call.1} parent=5 // pred_check_branch
        %218 = sbr.rel (%p215) target = $region36
      $region35: #{tpu_custom_call.1} parent=5 // pred_region
        %s219 = ssub.s32 %s13, 1
        %p220 = scmp.lt.s32.totalorder %s22, 1
        %s221 = scalar_select %p220, %s22, 1
        %p222 = scmp.lt.s32.totalorder %s23, 0
        %s223 = scalar_select %p222, %s23, 0
        %s224 = sadd.s32 %s223, %s221
        %s225 = smul.addr %s224, 8
        %s226 = scalar_lea.vmem %s0, %s225
        %p227 = pneg %p53
        %p228 = pneg %p50
        %p229 = scmp.lt.s32.totalorder %s22, 1
        %s230 = scalar_select %p229, %s22, 1
        %p231 = scmp.lt.s32.totalorder %s23, 0
        %s232 = scalar_select %p231, %s23, 0
        %s233 = sadd.s32 %s232, %s230
        %s234 = smul.addr %s233, 8
        %s235 = scalar_lea.vmem %s1, %s234
        %p236 = pneg %p81
        %p237 = pneg %p78
        %p238 = scmp.lt.s32.totalorder %s22, 1
        %s239 = scalar_select %p238, %s22, 1
        %s240 = smul.addr %s239, 4
        %s241 = scalar_lea.vmem %s2, %s240
        %p242 = pneg %p107
        %p243 = pneg %p104
        %p244 = scmp.lt.s32.totalorder %s22, 1
        %s245 = scalar_select %p244, %s22, 1
        %s246 = scalar_lea.vmem %s3, %s245
        %p247 = pneg %p133
        %p248 = pneg %p130
        %p249 = pneg %p161
        %p250 = pneg %p158
        %s251 = sand.u32 %s148, 1
        %s252 = scalar_lea.sflag [#allocation3], %s251
        %s253 = sand.u32 %s148, 1
        %s254 = smul.addr %s253, 8
        %s255 = scalar_lea.vmem [#allocation2], %s254
        %p256 = scmp.lt.s32.totalorder %s22, 1
        %s257 = scalar_select %p256, %s22, 1
        %p258 = scmp.lt.s32.totalorder %s23, 0
        %s259 = scalar_select %p258, %s23, 0
        %s260 = sadd.s32 %s259, %s257
        %s261 = smul.addr %s260, 8
        %s262 = scalar_lea.vmem %s0, %s261
        %p263 = scmp.lt.s32.totalorder %s22, 1
        %s264 = scalar_select %p263, %s22, 1
        %p265 = scmp.lt.s32.totalorder %s23, 0
        %s266 = scalar_select %p265, %s23, 0
        %s267 = sadd.s32 %s266, %s264
        %s268 = smul.addr %s267, 8
        %s269 = scalar_lea.vmem %s1, %s268
        %p270 = scmp.lt.s32.totalorder %s22, 1
        %s271 = scalar_select %p270, %s22, 1
        %s272 = smul.addr %s271, 4
        %s273 = scalar_lea.vmem %s2, %s272
        %p274 = scmp.lt.s32.totalorder %s22, 1
        %s275 = scalar_select %p274, %s22, 1
        %s276 = scalar_lea.vmem %s3, %s275
        %v277 = vld [vmem:[%s262] sm:$0xff]
        %vm278 = vcmask 39936
        %v279 = vsel %vm278, %v277, -inf
        %280 = vmax.xlane.f32.xlu0 %v279
        %v281 = vpop.xlane.xlu0 %280
        %v282 = vsub.f32 %v277, %v281
        %v283 = vmul.f32 %v282, 1.442695
        %v284 = vpow.pop %v283
        %v285 = vsel %vm278, %v284, 0.0
        %286 = vadd.xlane.f32.xlu0 %v285
        %v287 = vpop.xlane.xlu0 %286
        %v288 = vrcp.pop %v287
        %v289 = vmul.f32 %v284, %v288
        %v290 = vld [vmem:[%s276] sm:$0x1]
        %vm291 = vcmp.eq.s32.totalorder %v290, 0
        %v292 = vsel %vm291, 1, 0
        %v293 = vlaneseq
        %v294 = vshrl.u32 %v293, 7
        %v295 = vsub.s32 0, %v294
        %v296 = vrot.slane %v292, %v295
        %vm297 = vcmp.eq.s32.totalorder %v296, 1
        %299 = vset.pattern.permute.xlu0 0
        %300 = vperm.xlu0 %299, %v289
        %v301 = vpop.permute.xlu0 %300
        %v303 = vsel %vm297, %v301, 0.0
        %vm304 = vcmp.eq.s32.totalorder %v290, 1
        %v305 = vsel %vm304, 1, 0
        %v306 = vlaneseq
        %v307 = vshrl.u32 %v306, 7
        %v308 = vsub.s32 0, %v307
        %v309 = vrot.slane %v305, %v308
        %vm310 = vcmp.eq.s32.totalorder %v309, 1
        %311 = vset.pattern.permute.xlu0 1
        %312 = vperm.xlu0 %311, %v289
        %v313 = vpop.permute.xlu0 %312
        %v315 = vsel %vm310, %v313, %v303
        %vm316 = vcmp.eq.s32.totalorder %v290, 2
        %v317 = vsel %vm316, 1, 0
        %v318 = vlaneseq
        %v319 = vshrl.u32 %v318, 7
        %v320 = vsub.s32 0, %v319
        %v321 = vrot.slane %v317, %v320
        %vm322 = vcmp.eq.s32.totalorder %v321, 1
        %323 = vset.pattern.permute.xlu0 2
        %324 = vperm.xlu0 %323, %v289
        %v325 = vpop.permute.xlu0 %324
        %v327 = vsel %vm322, %v325, %v315
        %vm328 = vcmp.eq.s32.totalorder %v290, 3
        %v329 = vsel %vm328, 1, 0
        %v330 = vlaneseq
        %v331 = vshrl.u32 %v330, 7
        %v332 = vsub.s32 0, %v331
        %v333 = vrot.slane %v329, %v332
        %vm334 = vcmp.eq.s32.totalorder %v333, 1
        %335 = vset.pattern.permute.xlu0 3
        %336 = vperm.xlu0 %335, %v289
        %v337 = vpop.permute.xlu0 %336
        %v339 = vsel %vm334, %v337, %v327
        %vm340 = vcmp.eq.s32.totalorder %v290, 4
        %v341 = vsel %vm340, 1, 0
        %v342 = vlaneseq
        %v343 = vshrl.u32 %v342, 7
        %v344 = vsub.s32 0, %v343
        %v345 = vrot.slane %v341, %v344
        %vm346 = vcmp.eq.s32.totalorder %v345, 1
        %347 = vset.pattern.permute.xlu0 4
        %348 = vperm.xlu0 %347, %v289
        %v349 = vpop.permute.xlu0 %348
        %v351 = vsel %vm346, %v349, %v339
        %v352 = vld [vmem:[%s269] sm:$0xff]
        %v353 = vld [vmem:[%s273] sm:$0xf]
        %355 = vset.pattern.permute.xlu0 0
        %356 = vperm.xlu0 %355, %v352
        %v357 = vpop.permute.xlu0 %356
        %v359 = vlaneseq
        %v360 = vshrl.u32 %v359, 7
        %v361 = vsub.s32 0, %v360
        %v362 = vrot.slane %v353, %v361
        %v363 = vsub.f32 %v357, %v362
        %v364 = vand.u32 2147483647, %v363
        %365 = vset.pattern.permute.xlu0 1
        %366 = vperm.xlu0 %365, %v352
        %v367 = vpop.permute.xlu0 %366
        %v369 = vlaneseq
        %v370 = vshrl.u32 %v369, 7
        %v371 = vsub.s32 1, %v370
        %v372 = vrot.slane %v353, %v371
        %v373 = vsub.f32 %v367, %v372
        %v374 = vand.u32 2147483647, %v373
        %v375 = vadd.f32 %v364, %v374
        %376 = vset.pattern.permute.xlu0 2
        %377 = vperm.xlu0 %376, %v352
        %v378 = vpop.permute.xlu0 %377
        %v380 = vlaneseq
        %v381 = vshrl.u32 %v380, 7
        %v382 = vsub.s32 2, %v381
        %v383 = vrot.slane %v353, %v382
        %v384 = vsub.f32 %v378, %v383
        %v385 = vand.u32 2147483647, %v384
        %v386 = vadd.f32 %v375, %v385
        %387 = vset.pattern.permute.xlu0 3
        %388 = vperm.xlu0 %387, %v352
        %v389 = vpop.permute.xlu0 %388
        %v391 = vlaneseq
        %v392 = vshrl.u32 %v391, 7
        %v393 = vsub.s32 3, %v392
        %v394 = vrot.slane %v353, %v393
        %v395 = vsub.f32 %v389, %v394
        %v396 = vand.u32 2147483647, %v395
        %v397 = vadd.f32 %v386, %v396
        %v398 = vmul.f32 %v352, 0.5
        %400 = vrot.lane.b32.xlu0 %v398, 126
        %v401 = vpop.permute.xlu0 %400
        %v403 = vsub.f32 %v352, %v401
        %v404 = vadd.f32 %v352, %v401
        %v405 = vmul.f32 %v353, 0.5
        %v407 = vrot.slane %v405, 2
        %v409 = vsub.f32 %v353, %v407
        %v410 = vadd.f32 %v353, %v407
        %411 = vrot.lane.b32.xlu0 %v352, 127
        %v412 = vpop.permute.xlu0 %411
        %v414 = vmul.f32 %v352, %v412
        %v416 = vrot.slane %v353, 1
        %v418 = vmul.f32 %v353, %v416
        %420 = vset.pattern.permute.xlu0 0
        %421 = vperm.xlu0 %420, %v403
        %v422 = vpop.permute.xlu0 %421
        %v424 = vlaneseq
        %v425 = vshrl.u32 %v424, 7
        %v426 = vsub.s32 0, %v425
        %v427 = vrot.slane %v409, %v426
        %v428 = vmax.f32 %v422, %v427
        %429 = vset.pattern.permute.xlu0 1
        %430 = vperm.xlu0 %429, %v403
        %v431 = vpop.permute.xlu0 %430
        %v433 = vlaneseq
        %v434 = vshrl.u32 %v433, 7
        %v435 = vsub.s32 1, %v434
        %v436 = vrot.slane %v409, %v435
        %v437 = vmax.f32 %v431, %v436
        %439 = vset.pattern.permute.xlu0 0
        %440 = vperm.xlu0 %439, %v404
        %v441 = vpop.permute.xlu0 %440
        %v443 = vlaneseq
        %v444 = vshrl.u32 %v443, 7
        %v445 = vsub.s32 0, %v444
        %v446 = vrot.slane %v410, %v445
        %v447 = vmin.f32 %v441, %v446
        %448 = vset.pattern.permute.xlu0 1
        %449 = vperm.xlu0 %448, %v404
        %v450 = vpop.permute.xlu0 %449
        %v452 = vlaneseq
        %v453 = vshrl.u32 %v452, 7
        %v454 = vsub.s32 1, %v453
        %v455 = vrot.slane %v410, %v454
        %v456 = vmin.f32 %v450, %v455
        %v457 = vsub.f32 %v447, %v428
        %v458 = vmax.f32 %v457, 0.0
        %v459 = vsub.f32 %v456, %v437
        %v460 = vmax.f32 %v459, 0.0
        %v461 = vmul.f32 %v458, %v460
        %463 = vset.pattern.permute.xlu0 2
        %464 = vperm.xlu0 %463, %v414
        %v465 = vpop.permute.xlu0 %464
        %v467 = vlaneseq
        %v468 = vshrl.u32 %v467, 7
        %v469 = vsub.s32 2, %v468
        %v470 = vrot.slane %v418, %v469
        %v471 = vadd.f32 %v465, %v470
        %v472 = vsub.f32 %v471, %v461
        %v473 = vmin.f32 %v422, %v427
        %v474 = vmin.f32 %v431, %v436
        %v475 = vmax.f32 %v441, %v446
        %v476 = vmax.f32 %v450, %v455
        %v477 = vsub.f32 %v475, %v473
        %v478 = vsub.f32 %v476, %v474
        %v479 = vmul.f32 %v477, %v478
        %v480 = vadd.f32 %v472, 1e-06
        %v481 = vrcp.pop %v480
        %v482 = vmul.f32 %v461, %v481
        %v483 = vsub.f32 %v479, %v472
        %v484 = vadd.f32 %v479, 1e-06
        %v485 = vrcp.pop %v484
        %v486 = vmul.f32 %v483, %v485
        %v487 = vsub.f32 %v482, %v486
        %v488 = vsub.f32 %v397, %v351
        %v489 = vsub.f32 %v488, %v487
        %490 = vst [vmem:[%s255] sm:$0xff] %v489
        %s491 = sand.u32 %s148, 1
        %s492 = scalar_lea.sflag [#allocation3], %s491
        %s493 = sand.u32 %s148, 1
        %s494 = smul.addr %s493, 8
        %s495 = scalar_lea.vmem [#allocation2], %s494
        // Predicated region
        $region37: #{tpu_custom_call.1} parent=35 // pred_check
          %p496 = pneg %p158
        $region38: #{tpu_custom_call.1} parent=35 // pred_check_branch
          %498 = sbr.rel (%p496) target = $region40
        $region39: #{tpu_custom_call.1} parent=35 // pred_region
          %s500 = ssub.s32 128, 128
          %501 = vsyncadd %s492, %s500
          %s502 = sadd.s32 %s23, %s22
          %s503 = smul.addr %s502, 128
          %s504 = scalar_lea.hbm %s4, %s503
          %s506 = sshll.u32 %s495, 4
          %s507 = int_to_ptr.vmem [resolvable:$true] %s506
          %509 = dma.vmem_to_hbm [thread:$0]  %s507, 128, %s504, %s492
        $region40: #{tpu_custom_call.1} parent=35 // pred_fallthru
          _
      $region36: #{tpu_custom_call.1} parent=5 // pred_fallthru
        _
      %p510 = scmp.le.s32.totalorder 2, %s13
      // Predicated region
      $region41: #{tpu_custom_call.1} parent=5 // pred_check
        %p511 = pneg %p510
      $region42: #{tpu_custom_call.1} parent=5 // pred_check_branch
        %513 = sbr.rel (%p511) target = $region44
      $region43: #{tpu_custom_call.1} parent=5 // pred_region
        %s514 = ssub.s32 %s13, 2
        // Predicated region
        $region45: #{tpu_custom_call.1} parent=43 // pred_check
          %p515 = pneg %p164
        $region46: #{tpu_custom_call.1} parent=43 // pred_check_branch
          %517 = sbr.rel (%p515) target = $region48
        $region47: #{tpu_custom_call.1} parent=43 // pred_region
          %s518 = sand.u32 %s149, 1
          %s519 = scalar_lea.sflag [#allocation3], %s518
          %s520 = sand.u32 %s149, 1
          %s521 = smul.addr %s520, 8
          %s522 = scalar_lea.vmem [#allocation2], %s521
          %523 = dma.done %s519, 128
        $region48: #{tpu_custom_call.1} parent=43 // pred_fallthru
          _
      $region44: #{tpu_custom_call.1} parent=5 // pred_fallthru
        _
    $region6: #{tpu_custom_call.1} parent=1 // loop_footer
      %s17 = sadd.s32 1, %s13
    $region7: #{tpu_custom_call.1} parent=1 // loop_footer_branch
      %12 = sbr.rel target = $region3
    $region8: #{tpu_custom_call.1} parent=1 // loop_exit
      _
    %524 = vsyncpa [#allocation3], 1
    %s525 = scalar_lea.sflag [#allocation3], 1
    %526 = vsyncpa %s525, 1

</llo_original>
